<compile_context>
chip_gen: v5e
topology: v5e:2x2
jax: 0.10.0
libtpu: 0.0.40
codegen_flags: <defaults>
</compile_context>

<pallas_src>
import jax
import jax.numpy as jnp
from jax.experimental import pallas as pl
from jax.experimental.pallas import tpu as pltpu


# ----------------------------------------------------------------------------
# Kernels.  Block shapes per grid point (n, j):
#   g_ref  : (1, F_g, TP)     x_ref : (1, F_l, TP)
#   weights: (F_int, K) f32   b_ref : (F_int, 1)   wp_ref: (1, F_int)
#   bp_ref : (1,) f32 scalar in SMEM
#   out_ref: (1, F_l, TP)
# ----------------------------------------------------------------------------
def _attention_kernel_split(g_ref, x_ref, wg_ref, wx_ref, b_ref, wp_ref,
                            bp_ref, out_ref):
    g_blk = g_ref[0]                      # (F_g, TP)
    x_blk = x_ref[0]                      # (F_l, TP)

    # W_g(g) and W_x(x): 1x1 conv + folded BN as MXU matmuls over channels.
    g1 = jnp.dot(wg_ref[...], g_blk, preferred_element_type=jnp.float32)
    x1 = jnp.dot(wx_ref[...], x_blk, preferred_element_type=jnp.float32)

    # relu(g1 + x1 + (bg + bx)); bias broadcasts along lanes.
    h = jnp.maximum(g1 + x1 + b_ref[...], 0.0)            # (F_int, TP) f32

    # psi: 1x1 conv to one channel (+ folded BN), then sigmoid (EUP, has slack).
    logit = jnp.dot(wp_ref[...], h, preferred_element_type=jnp.float32)
    psi = jax.nn.sigmoid(logit + bp_ref[0])                # (1, TP)

    # out = x * psi (psi broadcast over the channel/sublane axis), f32 math,
    # cast only on store.
    out_ref[0] = (x_blk.astype(jnp.float32) * psi).astype(out_ref.dtype)


def _attention_kernel_fused(g_ref, x_ref, wgx_ref, b_ref, wp_ref, bp_ref,
                            out_ref):
    g_blk = g_ref[0]                      # (F_g, TP)
    x_blk = x_ref[0]                      # (F_l, TP)

    # Single MXU matmul with K = F_g + F_l: concat along sublanes in VMEM
    # (never in HBM); removes the (F_int, TP) g1 + x1 VALU add and one temp.
    gx = jnp.concatenate([g_blk, x_blk], axis=0)           # (F_g+F_l, TP)
    h = jnp.maximum(
        jnp.dot(wgx_ref[...], gx, preferred_element_type=jnp.float32)
        + b_ref[...], 0.0)                                  # (F_int, TP) f32

    logit = jnp.dot(wp_ref[...], h, preferred_element_type=jnp.float32)
    psi = jax.nn.sigmoid(logit + bp_ref[0])                 # (1, TP)
    out_ref[0] = (x_blk.astype(jnp.float32) * psi).astype(out_ref.dtype)


# ----------------------------------------------------------------------------
# Generation-aware VMEM budget.  Returns (tile_budget_bytes, vmem_limit_bytes).
# ----------------------------------------------------------------------------
def _vmem_budgets():
    cap = 64 << 20
    try:
        info = pltpu.get_tpu_info()
        cap = int(getattr(info, "vmem_capacity_bytes", cap) or cap)
    except Exception:
        pass
    if cap <= (64 << 20):            # v7x-class: 64 MiB physical per TC
        return 20 << 20, 28 << 20
    return 24 << 20, 32 << 20        # v5e / v6e: 128 MiB physical


# ----------------------------------------------------------------------------
# Tile sizing.  Counts: double-buffered g/x/out blocks, the f32 intermediates
# (gx / g1 / x1 / h / psi ~ (F_g+F_l+F_int+2) f32 per pixel), and the
# double-buffered constant weight/bias blocks.  Clamped to 2048 lanes (HBM
# efficiency is flat beyond ~1-2K lanes); prefers a divisor of HW; guarantees
# >= 2 grid points when N == 1 for v7x's two TensorCores.
# ----------------------------------------------------------------------------
def _choose_tile_pixels(HW, N, F_g, F_l, F_int, in_itemsize, out_itemsize,
                        vmem_budget_bytes):
    per_pix = (2 * (F_g + F_l) * in_itemsize       # g, x inputs (x2 buffers)
               + 2 * F_l * out_itemsize            # out        (x2 buffers)
               + (F_g + F_l + F_int + 2) * 4)      # f32 intermediates
    # Constant-index weight/bias blocks are still double-buffered by the
    # pipeline; subtract them from the budget instead of relying on Buffered(1).
    fixed = 2 * 4 * (F_int * (F_g + F_l) + 2 * F_int)
    avail = max(128 * per_pix, vmem_budget_bytes - fixed)
    max_pix = min(avail // per_pix, 2048)
    max_pix = max(128, (max_pix // 128) * 128)

    if HW <= 128:
        return HW                                   # full-dim block, always legal

    # v7x megacore balance: when N == 1, split the pixel axis into >= 2 tiles.
    if N == 1:
        half = (((HW + 1) // 2) + 127) // 128 * 128
        max_pix = min(max_pix, max(128, half))

    if HW <= max_pix:
        return HW

    # Prefer a lane-aligned tile that divides HW (no masked remainder tile).
    for t in range(max_pix, 127, -128):
        if HW % t == 0:
            return t
    return max_pix


# ----------------------------------------------------------------------------
# Wrapper
# ----------------------------------------------------------------------------
def attention_block(g_nchw, x_nchw, params, *, tile_pixels=None,
                    stream_dtype=None, fuse_projections=None):
    """g_nchw: (N, F_g, H, W), x_nchw: (N, F_l, H, W) -> (N, F_l, H, W).

    stream_dtype: optional dtype (e.g. jnp.bfloat16) for g/x/out HBM traffic;
    the kernel is HBM-bound, so bf16 streaming is ~2x.  Math stays f32.
    """
    N, F_g, H, W = g_nchw.shape
    _, F_l, _, _ = x_nchw.shape
    F_int = params["wg"].shape[1]
    HW = H * W

    # Zero-cost reshapes: NCHW -> (N, C, H*W).  No HBM transposes.
    g3 = g_nchw.reshape(N, F_g, HW)
    x3 = x_nchw.reshape(N, F_l, HW)
    if stream_dtype is not None:
        g3 = g3.astype(stream_dtype)   # in real pipelines activations arrive bf16
        x3 = x3.astype(stream_dtype)
    out_dtype = x3.dtype

    tile_budget, vmem_limit = _vmem_budgets()
    in_itemsize = jnp.dtype(g3.dtype).itemsize
    out_itemsize = jnp.dtype(out_dtype).itemsize
    if tile_pixels is None:
        tile_pixels = _choose_tile_pixels(HW, N, F_g, F_l, F_int,
                                          in_itemsize, out_itemsize, tile_budget)
    grid = (N, pl.cdiv(HW, tile_pixels))

    # Fuse the two projections into one K=(F_g+F_l) matmul only when channels
    # are sublane-aligned and large enough to matter (HBM dominates otherwise).
    if fuse_projections is None:
        fuse_projections = (F_g % 8 == 0 and F_l % 8 == 0 and (F_g + F_l) >= 64)

    # Weights transposed for the channels-on-sublane layout (tiny arrays, f32).
    wg_t = params["wg"].T.astype(jnp.float32)              # (F_int, F_g)
    wx_t = params["wx"].T.astype(jnp.float32)              # (F_int, F_l)
    b_int = (params["bg"] + params["bx"]).reshape(F_int, 1).astype(jnp.float32)
    wp_t = params["wp"].reshape(F_int, 1).T.astype(jnp.float32)   # (1, F_int)
    bp = params["bp"].reshape(1).astype(jnp.float32)        # scalar -> SMEM

    g_spec = pl.BlockSpec((1, F_g, tile_pixels), lambda n, j: (n, 0, j))
    x_spec = pl.BlockSpec((1, F_l, tile_pixels), lambda n, j: (n, 0, j))
    out_spec = pl.BlockSpec((1, F_l, tile_pixels), lambda n, j: (n, 0, j))
    b_spec = pl.BlockSpec((F_int, 1), lambda n, j: (0, 0))
    wp_spec = pl.BlockSpec((1, F_int), lambda n, j: (0, 0))
    bp_spec = pl.BlockSpec(memory_space=pltpu.MemorySpace.SMEM)

    if fuse_projections:
        wgx_t = jnp.concatenate([wg_t, wx_t], axis=1)        # (F_int, F_g+F_l)
        kernel = _attention_kernel_fused
        operands = (g3, x3, wgx_t, b_int, wp_t, bp)
        in_specs = [g_spec, x_spec,
                    pl.BlockSpec((F_int, F_g + F_l), lambda n, j: (0, 0)),
                    b_spec, wp_spec, bp_spec]
    else:
        kernel = _attention_kernel_split
        operands = (g3, x3, wg_t, wx_t, b_int, wp_t, bp)
        in_specs = [g_spec, x_spec,
                    pl.BlockSpec((F_int, F_g), lambda n, j: (0, 0)),
                    pl.BlockSpec((F_int, F_l), lambda n, j: (0, 0)),
                    b_spec, wp_spec, bp_spec]

    flops = 2 * N * HW * F_int * (F_g + F_l + 1) + 4 * N * HW * F_int
    bytes_accessed = ((g3.size + x3.size) * in_itemsize
                      + N * F_l * HW * out_itemsize
                      + 4 * (F_int * (F_g + F_l) + 2 * F_int + 1))
    cost = pl.CostEstimate(flops=int(flops),
                           transcendentals=int(2 * N * HW),   # exp + recip / pix
                           bytes_accessed=int(bytes_accessed))

    out3 = pl.pallas_call(
        kernel,
        out_shape=jax.ShapeDtypeStruct((N, F_l, HW), out_dtype),
        grid_spec=pltpu.PrefetchScalarGridSpec(
            num_scalar_prefetch=0,
            grid=grid,
            in_specs=in_specs,
            out_specs=out_spec,
        ),
        compiler_params=pltpu.CompilerParams(
            dimension_semantics=("parallel", "parallel"),
            vmem_limit_bytes=vmem_limit,
        ),
        cost_estimate=cost,
    )(*operands)

    return out3.reshape(N, F_l, H, W)


# ----------------------------------------------------------------------------
# Deterministic parameter construction (conv + BN, BN folded as affine).
# Conv weight (C_out, C_in, 1, 1) stored here as (C_in, C_out).
# Folded:  W' = W * gamma/sqrt(var+eps),  b' = (b - mean)*scale + beta
# ----------------------------------------------------------------------------
def _make_conv_bn(key, c_in, c_out, eps=1e-5):
    ks = jax.random.split(key, 6)
    w = jax.random.normal(ks[0], (c_in, c_out), jnp.float32) * 0.1
    b = jax.random.normal(ks[1], (c_out,), jnp.float32) * 0.1
    gamma = 1.0 + 0.1 * jax.random.normal(ks[2], (c_out,), jnp.float32)
    beta = 0.1 * jax.random.normal(ks[3], (c_out,), jnp.float32)
    mean = 0.1 * jax.random.normal(ks[4], (c_out,), jnp.float32)
    var = jnp.abs(jax.random.normal(ks[5], (c_out,), jnp.float32)) + 0.5
    scale = gamma / jnp.sqrt(var + eps)
    w_f = w * scale[None, :]
    b_f = (b - mean) * scale + beta
    return w_f, b_f


def make_params(key, F_g, F_l, F_int):
    k1, k2, k3 = jax.random.split(key, 3)
    wg, bg = _make_conv_bn(k1, F_g, F_int)
    wx, bx = _make_conv_bn(k2, F_l, F_int)
    wp, bp = _make_conv_bn(k3, F_int, 1)
    return {"wg": wg, "bg": bg, "wx": wx, "bx": bx, "wp": wp, "bp": bp}


# ----------------------------------------------------------------------------
# Pure-JAX reference (same math, no Pallas) for a sanity check.
# ----------------------------------------------------------------------------
def reference(g_nchw, x_nchw, p):
    N, F_g, H, W = g_nchw.shape
    F_l = x_nchw.shape[1]
    g2d = jnp.transpose(g_nchw, (0, 2, 3, 1)).reshape(-1, F_g)
    x2d = jnp.transpose(x_nchw, (0, 2, 3, 1)).reshape(-1, F_l)
    g1 = g2d @ p["wg"] + p["bg"]
    x1 = x2d @ p["wx"] + p["bx"]
    h = jnp.maximum(g1 + x1, 0.0)
    psi = jax.nn.sigmoid(h @ p["wp"] + p["bp"])
    out = x2d * psi
    return jnp.transpose(out.reshape(N, H, W, F_l), (0, 3, 1, 2))


if __name__ == "__main__":
    key = jax.random.PRNGKey(0)

    # --- Test 1: f32, small channels (split-projection path) -----------------
    N, F_g, F_l, F_int, H, W = 2, 4, 4, 32, 16, 16
    kg, kx, kp = jax.random.split(key, 3)
    g = jax.random.normal(kg, (N, F_g, H, W), jnp.float32)
    x = jax.random.normal(kx, (N, F_l, H, W), jnp.float32)
    params = make_params(kp, F_g, F_l, F_int)
    out = jax.block_until_ready(attention_block(g, x, params))
    ref = reference(g, x, params)
    assert out.shape == (N, F_l, H, W)
    assert jnp.allclose(out, ref, atol=1e-3, rtol=1e-3), "f32 mismatch"

    # --- Test 2: bf16 streaming (halves HBM bytes on a mem-bound kernel) -----
    out_bf16 = jax.block_until_ready(
        attention_block(g, x, params, stream_dtype=jnp.bfloat16))
    assert out_bf16.dtype == jnp.bfloat16
    assert jnp.allclose(out_bf16.astype(jnp.float32), ref,
                        atol=5e-2, rtol=5e-2), "bf16 mismatch"

    # --- Test 3: fused projection path + N==1 megacore grid split ------------
    k2 = jax.random.split(key, 3)
    N2, Fg2, Fl2, Fi2, H2, W2 = 1, 64, 64, 64, 16, 16
    g2 = jax.random.normal(k2[0], (N2, Fg2, H2, W2), jnp.float32)
    x2 = jax.random.normal(k2[1], (N2, Fl2, H2, W2), jnp.float32)
    p2 = make_params(k2[2], Fg2, Fl2, Fi2)
    out2 = jax.block_until_ready(attention_block(g2, x2, p2))
    ref2 = reference(g2, x2, p2)
    assert jnp.allclose(out2, ref2, atol=2e-2, rtol=2e-2), "fused mismatch"

    # --- Test 4: non-divisible HW + non-multiple-of-8 channels ---------------
    k3 = jax.random.split(jax.random.PRNGKey(1), 3)
    N3, Fg3, Fl3, Fi3, H3, W3 = 1, 3, 5, 32, 10, 13
    g3n = jax.random.normal(k3[0], (N3, Fg3, H3, W3), jnp.float32)
    x3n = jax.random.normal(k3[1], (N3, Fl3, H3, W3), jnp.float32)
    p3 = make_params(k3[2], Fg3, Fl3, Fi3)
    out3 = jax.block_until_ready(
        attention_block(g3n, x3n, p3, tile_pixels=128))   # masked last tile
    ref3 = reference(g3n, x3n, p3)
    assert jnp.allclose(out3, ref3, atol=1e-3, rtol=1e-3), "ragged mismatch"

    print("KERNEL_OK")
</pallas_src>

<mosaic_0001>
module attributes {stable_mosaic.version = 11 : i64} {
  func.func @_attention_kernel_split(%arg0: i32, %arg1: i32, %arg2: memref<1x4x256xf32, #tpu.memory_space<vmem>>, %arg3: memref<1x4x256xf32, #tpu.memory_space<vmem>>, %arg4: memref<32x4xf32, #tpu.memory_space<vmem>>, %arg5: memref<32x4xf32, #tpu.memory_space<vmem>>, %arg6: memref<32x1xf32, #tpu.memory_space<vmem>>, %arg7: memref<1x32xf32, #tpu.memory_space<vmem>>, %arg8: memref<1xf32, #tpu.memory_space<smem>>, %arg9: memref<1x4x256xf32, #tpu.memory_space<vmem>>) attributes {dimension_semantics = [#tpu.dimension_semantics<parallel>, #tpu.dimension_semantics<parallel>], iteration_bounds = array<i64: 2, 1>, scalar_prefetch = 0 : i64, scratch_operands = 0 : i64, tpu.core_type = #tpu.core_type<tc>, window_params = [{transform_indices = @transform_0, window_bounds = array<i64: 1, 4, 256>}, {transform_indices = @transform_1, window_bounds = array<i64: 1, 4, 256>}, {pipeline_mode = #tpu.pipeline_mode<synchronous>, transform_indices = @transform_2, window_bounds = array<i64: 32, 4>}, {pipeline_mode = #tpu.pipeline_mode<synchronous>, transform_indices = @transform_3, window_bounds = array<i64: 32, 4>}, {pipeline_mode = #tpu.pipeline_mode<synchronous>, transform_indices = @transform_4, window_bounds = array<i64: 32, 1>}, {pipeline_mode = #tpu.pipeline_mode<synchronous>, transform_indices = @transform_5, window_bounds = array<i64: 1, 32>}, {transform_indices = @transform_6, window_bounds = array<i64: 1>}, {transform_indices = @transform_7, window_bounds = array<i64: 1, 4, 256>}]} {
    %c0 = arith.constant 0 : index
    %c0_0 = arith.constant 0 : index
    %c0_1 = arith.constant 0 : index
    %0 = vector.load %arg2[%c0, %c0_0, %c0_1] : memref<1x4x256xf32, #tpu.memory_space<vmem>>, vector<1x4x256xf32>
    %1 = vector.shape_cast %0 : vector<1x4x256xf32> to vector<4x256xf32>
    %c0_2 = arith.constant 0 : index
    %c0_3 = arith.constant 0 : index
    %c0_4 = arith.constant 0 : index
    %2 = vector.load %arg3[%c0_2, %c0_3, %c0_4] : memref<1x4x256xf32, #tpu.memory_space<vmem>>, vector<1x4x256xf32>
    %3 = vector.shape_cast %2 : vector<1x4x256xf32> to vector<4x256xf32>
    %c0_5 = arith.constant 0 : index
    %c0_6 = arith.constant 0 : index
    %4 = vector.load %arg4[%c0_5, %c0_6] : memref<32x4xf32, #tpu.memory_space<vmem>>, vector<32x4xf32>
    %cst = arith.constant dense<0.000000e+00> : vector<32x256xf32>
    %5 = tpu.matmul %4, %1, %cst {dimension_numbers = #tpu.dot_dimension_numbers<[1], [0], [0], [1], [0, 0, 1, 1], [], []>} : vector<32x4xf32>, vector<4x256xf32>, vector<32x256xf32> -> vector<32x256xf32>
    %c0_7 = arith.constant 0 : index
    %c0_8 = arith.constant 0 : index
    %6 = vector.load %arg5[%c0_7, %c0_8] : memref<32x4xf32, #tpu.memory_space<vmem>>, vector<32x4xf32>
    %cst_9 = arith.constant dense<0.000000e+00> : vector<32x256xf32>
    %7 = tpu.matmul %6, %3, %cst_9 {dimension_numbers = #tpu.dot_dimension_numbers<[1], [0], [0], [1], [0, 0, 1, 1], [], []>} : vector<32x4xf32>, vector<4x256xf32>, vector<32x256xf32> -> vector<32x256xf32>
    %8 = arith.addf %5, %7 : vector<32x256xf32>
    %c0_10 = arith.constant 0 : index
    %c0_11 = arith.constant 0 : index
    %9 = vector.load %arg6[%c0_10, %c0_11] : memref<32x1xf32, #tpu.memory_space<vmem>>, vector<32x1xf32>
    %10 = vector.broadcast %9 : vector<32x1xf32> to vector<32x256xf32>
    %11 = arith.addf %8, %10 : vector<32x256xf32>
    %cst_12 = arith.constant 0.000000e+00 : f32
    %12 = vector.broadcast %cst_12 : f32 to vector<32x256xf32>
    %13 = arith.maximumf %11, %12 : vector<32x256xf32>
    %c0_13 = arith.constant 0 : index
    %c0_14 = arith.constant 0 : index
    %14 = vector.load %arg7[%c0_13, %c0_14] : memref<1x32xf32, #tpu.memory_space<vmem>>, vector<1x32xf32>
    %cst_15 = arith.constant dense<0.000000e+00> : vector<1x256xf32>
    %15 = tpu.matmul %14, %13, %cst_15 {dimension_numbers = #tpu.dot_dimension_numbers<[1], [0], [0], [1], [0, 0, 1, 1], [], []>} : vector<1x32xf32>, vector<32x256xf32>, vector<1x256xf32> -> vector<1x256xf32>
    %c0_16 = arith.constant 0 : index
    %16 = memref.load %arg8[%c0_16] : memref<1xf32, #tpu.memory_space<smem>>
    %17 = vector.broadcast %16 : f32 to vector<1x256xf32>
    %18 = arith.addf %15, %17 : vector<1x256xf32>
    %19 = arith.negf %18 : vector<1x256xf32>
    %20 = math.exp %19 : vector<1x256xf32>
    %cst_17 = arith.constant 1.000000e+00 : f32
    %21 = vector.broadcast %cst_17 : f32 to vector<1x256xf32>
    %22 = arith.addf %21, %20 : vector<1x256xf32>
    %23 = arith.divf %21, %22 : vector<1x256xf32>
    %24 = vector.broadcast %23 : vector<1x256xf32> to vector<4x256xf32>
    %25 = arith.mulf %3, %24 : vector<4x256xf32>
    %c0_18 = arith.constant 0 : index
    %c0_19 = arith.constant 0 : index
    %c0_20 = arith.constant 0 : index
    %26 = vector.load %arg9[%c0_18, %c0_19, %c0_20] : memref<1x4x256xf32, #tpu.memory_space<vmem>>, vector<1x4x256xf32>
    %27 = vector.shape_cast %26 : vector<1x4x256xf32> to vector<4x256xf32>
    %28 = vector.shape_cast %25 : vector<4x256xf32> to vector<1x4x256xf32>
    tpu.vector_store %arg9[%c0_18, %c0_19, %c0_20], %28 {strides = array<i32>} : memref<1x4x256xf32, #tpu.memory_space<vmem>>, vector<1x4x256xf32>,
    return
  }
  func.func @transform_0(%arg0: i32, %arg1: i32) -> (i32, i32, i32) {
    %c0_i32 = arith.constant 0 : i32
    %c0_i32_0 = arith.constant 0 : i32
    return %arg0, %c0_i32, %arg1 : i32, i32, i32
  }
  func.func @transform_1(%arg0: i32, %arg1: i32) -> (i32, i32, i32) {
    %c0_i32 = arith.constant 0 : i32
    %c0_i32_0 = arith.constant 0 : i32
    return %arg0, %c0_i32, %arg1 : i32, i32, i32
  }
  func.func @transform_2(%arg0: i32, %arg1: i32) -> (i32, i32) {
    %c0_i32 = arith.constant 0 : i32
    %c0_i32_0 = arith.constant 0 : i32
    %c0_i32_1 = arith.constant 0 : i32
    return %c0_i32, %c0_i32_0 : i32, i32
  }
  func.func @transform_3(%arg0: i32, %arg1: i32) -> (i32, i32) {
    %c0_i32 = arith.constant 0 : i32
    %c0_i32_0 = arith.constant 0 : i32
    %c0_i32_1 = arith.constant 0 : i32
    return %c0_i32, %c0_i32_0 : i32, i32
  }
  func.func @transform_4(%arg0: i32, %arg1: i32) -> (i32, i32) {
    %c0_i32 = arith.constant 0 : i32
    %c0_i32_0 = arith.constant 0 : i32
    %c0_i32_1 = arith.constant 0 : i32
    return %c0_i32, %c0_i32_0 : i32, i32
  }
  func.func @transform_5(%arg0: i32, %arg1: i32) -> (i32, i32) {
    %c0_i32 = arith.constant 0 : i32
    %c0_i32_0 = arith.constant 0 : i32
    %c0_i32_1 = arith.constant 0 : i32
    return %c0_i32, %c0_i32_0 : i32, i32
  }
  func.func @transform_6(%arg0: i32, %arg1: i32) -> i32 {
    %c0_i32 = arith.constant 0 : i32
    %c0_i32_0 = arith.constant 0 : i32
    return %c0_i32 : i32
  }
  func.func @transform_7(%arg0: i32, %arg1: i32) -> (i32, i32, i32) {
    %c0_i32 = arith.constant 0 : i32
    %c0_i32_0 = arith.constant 0 : i32
    return %arg0, %c0_i32, %arg1 : i32, i32, i32
  }
}

</mosaic_0001>

<llo_original>
// kernel: tpu_custom_call.1
$region0: #{tpu_custom_call.1}
  #allocation0 [shape = 'u32[]', space=smem, size = 0x4, offset = 0x4, fixed_abs, tag = 'smem constant byte address 0x4 - core index']
  #allocation1 [shape = 'u32[72,128]{1,0:T(1,128)}', space=vmem, size = 0x9000, scoped, tag = 'internal scratch']
  #allocation2 [shape = 'f32[1]{0:T(128)S(6)}', space=smem, size = 0x200, scoped, tag = 'scoped memory for tpu_custom_call.1']
  %s0 = inlined_call_operand.vmem [shape: f32[2,4,256], index: 0, kind: input, shape index: {}]
  %s1 = inlined_call_operand.vmem [shape: f32[2,4,256], index: 1, kind: input, shape index: {}]
  %s2 = inlined_call_operand.vmem [shape: f32[32,4], index: 2, kind: input, shape index: {}]
  %s3 = inlined_call_operand.vmem [shape: f32[32,4], index: 3, kind: input, shape index: {}]
  %s4 = inlined_call_operand.vmem [shape: f32[32,1], index: 4, kind: input, shape index: {}]
  %s5 = inlined_call_operand.vmem [shape: f32[1,32], index: 5, kind: input, shape index: {}]
  %s6 = inlined_call_operand.<no memory space> [shape: f32[1], index: 6, kind: input, shape index: {}]
  %s7 = inlined_call_operand.hbm [shape: f32[2,4,256], index: 7, kind: output, shape index: {}]
  %s8 = sld [smem:[#allocation0]]
  $region61: #{tpu_custom_call.1} parent=0
    _
  %s10 = ssub.s32 1, %s8
  %s11 = scalar_select 0, %s10, %s8
  %12 = sst [smem:[#allocation2]] %s6
  $region1: #{tpu_custom_call.1} parent=0
    #allocation3 [shape = 'u8[8192]{0}', space=vmem, size = 0x2000, scoped, tag = 'output window, operand 0']
    #allocation4 [shape = 's32[2]{0}', space=sflag, size = 0x8, scoped, tag = 'scoped memory for tpu_custom_call.1']
    %13 = vsyncpa [#allocation4], 0
    %s14 = scalar_lea.sflag [#allocation4], 1
    %15 = vsyncpa %s14, 0
    loop: start=0, step=1, limit=4
    $region2: #{tpu_custom_call.1} parent=1 // loop_pre_header
      _
    $region3: #{tpu_custom_call.1} parent=1 // loop_header
      %s17 = sphi 0, %s21
      %p18 = scmp.ge.s32.totalorder %s17, 4
      %s24 = sphi 0, %s36
      %s25 = sphi 0, %s32
      %s26 = sphi 0, %s24
      %s27 = sphi 0, %s25
      %s28 = sphi 0, %s26
      %s29 = sphi 0, %s27
      %s41 = sphi 0, %s43
      %s44 = sphi 0, %s41
      %s45 = sphi 0, %s44
      %s61 = sphi 0, %s45
      %s69 = sphi 0, %s71
      %s72 = sphi 0, %s69
      %s73 = sphi 0, %s72
      %s89 = sphi 0, %s73
      %s93 = sphi 0, %s93
      %s95 = sphi 0, %s93
      %s96 = sphi 0, %s95
      %s110 = sphi 0, %s96
      %s114 = sphi 0, %s114
      %s116 = sphi 0, %s114
      %s117 = sphi 0, %s116
      %s131 = sphi 0, %s117
      %s135 = sphi 0, %s135
      %s137 = sphi 0, %s135
      %s138 = sphi 0, %s137
      %s152 = sphi 0, %s138
      %s156 = sphi 0, %s156
      %s158 = sphi 0, %s156
      %s159 = sphi 0, %s158
      %s173 = sphi 0, %s159
      %s177 = sphi 0, %s177
      %s179 = sphi 0, %s177
      %s180 = sphi 0, %s179
      %s194 = sphi 0, %s180
      %s202 = sphi 0, %s204
      %s205 = sphi 0, %s202
      %s206 = sphi 0, %s205
      %s222 = sphi 0, %s206
    $region4: #{tpu_custom_call.1} parent=1 // loop_header_branch
      %20 = sbr.rel (%p18) target = $region8
    $region5: #{tpu_custom_call.1} parent=1 // loop_body
      %s22 = ssub.s32 %s17, 1
      %s23 = ssub.s32 %s17, 2
      %s30 = sadd.s32 1, %s25
      %p31 = scmp.ge.s32.totalorder %s30, 1
      %s32 = scalar_select %p31, 0, %s30
      %s33 = sadd.s32 1, %s24
      %s34 = scalar_select %p31, %s33, %s24
      %p35 = scmp.ge.s32.totalorder %s34, 2
      %s36 = scalar_select %p35, 0, %s34
      %s37 = ssub.s32 %s24, %s36
      %s38 = ssub.s32 %s25, %s32
      %s39 = sor.u32 %s37, %s38
      %p40 = scmp.eq.s32.totalorder %s39, 0
      %s42 = sadd.s32 %s41, 1
      %s43 = scalar_select %p40, %s41, %s42
      %p46 = pneg %p40
      %p47 = scmp.eq.s32.totalorder %s17, 1
      %p48 = por %p46, %p47
      %p49 = scmp.ne.s32.totalorder %s41, %s44
      %p50 = scmp.eq.s32.totalorder %s17, 0
      %p51 = por %p49, %p50
      %p52 = scmp.ne.s32.totalorder %s41, %s44
      %p53 = scmp.eq.s32.totalorder %s22, 1
      %p54 = por %p52, %p53
      %p55 = scmp.ne.s32.totalorder %s44, %s45
      %p56 = scmp.eq.s32.totalorder %s22, 0
      %p57 = por %p55, %p56
      %p58 = scmp.ne.s32.totalorder %s44, %s45
      %p59 = scmp.eq.s32.totalorder %s23, 1
      %p60 = por %p58, %p59
      %p62 = scmp.ne.s32.totalorder %s45, %s61
      %p63 = scmp.eq.s32.totalorder %s23, 0
      %p64 = por %p62, %p63
      %s65 = ssub.s32 %s24, %s36
      %s66 = ssub.s32 %s25, %s32
      %s67 = sor.u32 %s65, %s66
      %p68 = scmp.eq.s32.totalorder %s67, 0
      %s70 = sadd.s32 %s69, 1
      %s71 = scalar_select %p68, %s69, %s70
      %p74 = pneg %p68
      %p75 = scmp.eq.s32.totalorder %s17, 1
      %p76 = por %p74, %p75
      %p77 = scmp.ne.s32.totalorder %s69, %s72
      %p78 = scmp.eq.s32.totalorder %s17, 0
      %p79 = por %p77, %p78
      %p80 = scmp.ne.s32.totalorder %s69, %s72
      %p81 = scmp.eq.s32.totalorder %s22, 1
      %p82 = por %p80, %p81
      %p83 = scmp.ne.s32.totalorder %s72, %s73
      %p84 = scmp.eq.s32.totalorder %s22, 0
      %p85 = por %p83, %p84
      %p86 = scmp.ne.s32.totalorder %s72, %s73
      %p87 = scmp.eq.s32.totalorder %s23, 1
      %p88 = por %p86, %p87
      %p90 = scmp.ne.s32.totalorder %s73, %s89
      %p91 = scmp.eq.s32.totalorder %s23, 0
      %p92 = por %p90, %p91
      %s94 = sadd.s32 %s93, 1
      %p97 = scmp.eq.s32.totalorder %s17, 1
      %p98 = scmp.ne.s32.totalorder %s93, %s95
      %p99 = scmp.eq.s32.totalorder %s17, 0
      %p100 = por %p98, %p99
      %p101 = scmp.ne.s32.totalorder %s93, %s95
      %p102 = scmp.eq.s32.totalorder %s22, 1
      %p103 = por %p101, %p102
      %p104 = scmp.ne.s32.totalorder %s95, %s96
      %p105 = scmp.eq.s32.totalorder %s22, 0
      %p106 = por %p104, %p105
      %p107 = scmp.ne.s32.totalorder %s95, %s96
      %p108 = scmp.eq.s32.totalorder %s23, 1
      %p109 = por %p107, %p108
      %p111 = scmp.ne.s32.totalorder %s96, %s110
      %p112 = scmp.eq.s32.totalorder %s23, 0
      %p113 = por %p111, %p112
      %s115 = sadd.s32 %s114, 1
      %p118 = scmp.eq.s32.totalorder %s17, 1
      %p119 = scmp.ne.s32.totalorder %s114, %s116
      %p120 = scmp.eq.s32.totalorder %s17, 0
      %p121 = por %p119, %p120
      %p122 = scmp.ne.s32.totalorder %s114, %s116
      %p123 = scmp.eq.s32.totalorder %s22, 1
      %p124 = por %p122, %p123
      %p125 = scmp.ne.s32.totalorder %s116, %s117
      %p126 = scmp.eq.s32.totalorder %s22, 0
      %p127 = por %p125, %p126
      %p128 = scmp.ne.s32.totalorder %s116, %s117
      %p129 = scmp.eq.s32.totalorder %s23, 1
      %p130 = por %p128, %p129
      %p132 = scmp.ne.s32.totalorder %s117, %s131
      %p133 = scmp.eq.s32.totalorder %s23, 0
      %p134 = por %p132, %p133
      %s136 = sadd.s32 %s135, 1
      %p139 = scmp.eq.s32.totalorder %s17, 1
      %p140 = scmp.ne.s32.totalorder %s135, %s137
      %p141 = scmp.eq.s32.totalorder %s17, 0
      %p142 = por %p140, %p141
      %p143 = scmp.ne.s32.totalorder %s135, %s137
      %p144 = scmp.eq.s32.totalorder %s22, 1
      %p145 = por %p143, %p144
      %p146 = scmp.ne.s32.totalorder %s137, %s138
      %p147 = scmp.eq.s32.totalorder %s22, 0
      %p148 = por %p146, %p147
      %p149 = scmp.ne.s32.totalorder %s137, %s138
      %p150 = scmp.eq.s32.totalorder %s23, 1
      %p151 = por %p149, %p150
      %p153 = scmp.ne.s32.totalorder %s138, %s152
      %p154 = scmp.eq.s32.totalorder %s23, 0
      %p155 = por %p153, %p154
      %s157 = sadd.s32 %s156, 1
      %p160 = scmp.eq.s32.totalorder %s17, 1
      %p161 = scmp.ne.s32.totalorder %s156, %s158
      %p162 = scmp.eq.s32.totalorder %s17, 0
      %p163 = por %p161, %p162
      %p164 = scmp.ne.s32.totalorder %s156, %s158
      %p165 = scmp.eq.s32.totalorder %s22, 1
      %p166 = por %p164, %p165
      %p167 = scmp.ne.s32.totalorder %s158, %s159
      %p168 = scmp.eq.s32.totalorder %s22, 0
      %p169 = por %p167, %p168
      %p170 = scmp.ne.s32.totalorder %s158, %s159
      %p171 = scmp.eq.s32.totalorder %s23, 1
      %p172 = por %p170, %p171
      %p174 = scmp.ne.s32.totalorder %s159, %s173
      %p175 = scmp.eq.s32.totalorder %s23, 0
      %p176 = por %p174, %p175
      %s178 = sadd.s32 %s177, 1
      %p181 = scmp.eq.s32.totalorder %s17, 1
      %p182 = scmp.ne.s32.totalorder %s177, %s179
      %p183 = scmp.eq.s32.totalorder %s17, 0
      %p184 = por %p182, %p183
      %p185 = scmp.ne.s32.totalorder %s177, %s179
      %p186 = scmp.eq.s32.totalorder %s22, 1
      %p187 = por %p185, %p186
      %p188 = scmp.ne.s32.totalorder %s179, %s180
      %p189 = scmp.eq.s32.totalorder %s22, 0
      %p190 = por %p188, %p189
      %p191 = scmp.ne.s32.totalorder %s179, %s180
      %p192 = scmp.eq.s32.totalorder %s23, 1
      %p193 = por %p191, %p192
      %p195 = scmp.ne.s32.totalorder %s180, %s194
      %p196 = scmp.eq.s32.totalorder %s23, 0
      %p197 = por %p195, %p196
      %s198 = ssub.s32 %s24, %s36
      %s199 = ssub.s32 %s25, %s32
      %s200 = sor.u32 %s198, %s199
      %p201 = scmp.eq.s32.totalorder %s200, 0
      %s203 = sadd.s32 %s202, 1
      %s204 = scalar_select %p201, %s202, %s203
      %p207 = pneg %p201
      %p208 = scmp.eq.s32.totalorder %s17, 1
      %p209 = por %p207, %p208
      %p210 = scmp.ne.s32.totalorder %s202, %s205
      %p211 = scmp.eq.s32.totalorder %s17, 0
      %p212 = por %p210, %p211
      %p213 = scmp.ne.s32.totalorder %s202, %s205
      %p214 = scmp.eq.s32.totalorder %s22, 1
      %p215 = por %p213, %p214
      %p216 = scmp.ne.s32.totalorder %s205, %s206
      %p217 = scmp.eq.s32.totalorder %s22, 0
      %p218 = por %p216, %p217
      %p219 = scmp.ne.s32.totalorder %s205, %s206
      %p220 = scmp.eq.s32.totalorder %s23, 1
      %p221 = por %p219, %p220
      %p223 = scmp.ne.s32.totalorder %s206, %s222
      %p224 = scmp.eq.s32.totalorder %s23, 0
      %p225 = por %p223, %p224
      %p226 = scmp.le.s32.totalorder 1, %s17
      %p227 = scmp.lt.s32.totalorder %s17, 3
      %p228 = pnand %p226, %p227
      %p229 = pneg %p228
      // Predicated region
      $region9: #{tpu_custom_call.1} parent=5 // pred_check
        _
      $region10: #{tpu_custom_call.1} parent=5 // pred_check_branch
        %231 = sbr.rel (%p228) target = $region12
      $region11: #{tpu_custom_call.1} parent=5 // pred_region
        %s232 = ssub.s32 %s17, 1
        // Predicated region
        $region13: #{tpu_custom_call.1} parent=11 // pred_check
          %p233 = pneg %p106
        $region14: #{tpu_custom_call.1} parent=11 // pred_check_branch
          %235 = sbr.rel (%p233) target = $region16
        $region15: #{tpu_custom_call.1} parent=11 // pred_region
          _
        $region16: #{tpu_custom_call.1} parent=11 // pred_fallthru
          _
        // Predicated region
        $region17: #{tpu_custom_call.1} parent=11 // pred_check
          %p236 = pneg %p127
        $region18: #{tpu_custom_call.1} parent=11 // pred_check_branch
          %238 = sbr.rel (%p236) target = $region20
        $region19: #{tpu_custom_call.1} parent=11 // pred_region
          _
        $region20: #{tpu_custom_call.1} parent=11 // pred_fallthru
          _
        // Predicated region
        $region21: #{tpu_custom_call.1} parent=11 // pred_check
          %p239 = pneg %p148
        $region22: #{tpu_custom_call.1} parent=11 // pred_check_branch
          %241 = sbr.rel (%p239) target = $region24
        $region23: #{tpu_custom_call.1} parent=11 // pred_region
          _
        $region24: #{tpu_custom_call.1} parent=11 // pred_fallthru
          _
        // Predicated region
        $region25: #{tpu_custom_call.1} parent=11 // pred_check
          %p242 = pneg %p169
        $region26: #{tpu_custom_call.1} parent=11 // pred_check_branch
          %244 = sbr.rel (%p242) target = $region28
        $region27: #{tpu_custom_call.1} parent=11 // pred_region
          _
        $region28: #{tpu_custom_call.1} parent=11 // pred_fallthru
          _
        // Predicated region
        $region29: #{tpu_custom_call.1} parent=11 // pred_check
          %p245 = pneg %p190
        $region30: #{tpu_custom_call.1} parent=11 // pred_check_branch
          %247 = sbr.rel (%p245) target = $region32
        $region31: #{tpu_custom_call.1} parent=11 // pred_region
          _
        $region32: #{tpu_custom_call.1} parent=11 // pred_fallthru
          _
      $region12: #{tpu_custom_call.1} parent=5 // pred_fallthru
        _
      %p248 = scmp.lt.s32.totalorder %s17, 2
      // Predicated region
      $region33: #{tpu_custom_call.1} parent=5 // pred_check
        %p249 = pneg %p248
      $region34: #{tpu_custom_call.1} parent=5 // pred_check_branch
        %251 = sbr.rel (%p249) target = $region36
      $region35: #{tpu_custom_call.1} parent=5 // pred_region
        // Predicated region
        $region37: #{tpu_custom_call.1} parent=35 // pred_check
          %p252 = pneg %p51
        $region38: #{tpu_custom_call.1} parent=35 // pred_check_branch
          %254 = sbr.rel (%p252) target = $region40
        $region39: #{tpu_custom_call.1} parent=35 // pred_region
          %s255 = smul.u32 2, %s25
          %p256 = scmp.lt.s32.totalorder %s24, 1
          %s257 = scalar_select %p256, %s24, 1
          %p258 = scmp.lt.s32.totalorder %s255, 1
          %s259 = scalar_select %p258, %s255, 1
          %s260 = smul.addr %s257, 2
          %s261 = sadd.s32 %s259, %s260
          %s262 = smul.addr %s261, 4
          %s263 = scalar_lea.vmem %s0, %s262
          %s264 = smul.u32 2, %s25
        $region40: #{tpu_custom_call.1} parent=35 // pred_fallthru
          _
        // Predicated region
        $region41: #{tpu_custom_call.1} parent=35 // pred_check
          %p265 = pneg %p79
        $region42: #{tpu_custom_call.1} parent=35 // pred_check_branch
          %267 = sbr.rel (%p265) target = $region44
        $region43: #{tpu_custom_call.1} parent=35 // pred_region
          %s268 = smul.u32 2, %s25
          %p269 = scmp.lt.s32.totalorder %s24, 1
          %s270 = scalar_select %p269, %s24, 1
          %p271 = scmp.lt.s32.totalorder %s268, 1
          %s272 = scalar_select %p271, %s268, 1
          %s273 = smul.addr %s270, 2
          %s274 = sadd.s32 %s272, %s273
          %s275 = smul.addr %s274, 4
          %s276 = scalar_lea.vmem %s1, %s275
          %s277 = smul.u32 2, %s25
        $region44: #{tpu_custom_call.1} parent=35 // pred_fallthru
          _
      $region36: #{tpu_custom_call.1} parent=5 // pred_fallthru
        _
      %p278 = scmp.le.s32.totalorder 1, %s17
      %p279 = scmp.lt.s32.totalorder %s17, 3
      %p280 = pnand %p278, %p279
      %p281 = pneg %p280
      // Predicated region
      $region45: #{tpu_custom_call.1} parent=5 // pred_check
        _
      $region46: #{tpu_custom_call.1} parent=5 // pred_check_branch
        %283 = sbr.rel (%p280) target = $region48
      $region47: #{tpu_custom_call.1} parent=5 // pred_region
        %s284 = ssub.s32 %s17, 1
        %s285 = smul.u32 2, %s27
        %p286 = scmp.lt.s32.totalorder %s26, 1
        %s287 = scalar_select %p286, %s26, 1
        %p288 = scmp.lt.s32.totalorder %s285, 1
        %s289 = scalar_select %p288, %s285, 1
        %s290 = smul.addr %s287, 2
        %s291 = sadd.s32 %s289, %s290
        %s292 = smul.addr %s291, 4
        %s293 = scalar_lea.vmem %s0, %s292
        %p294 = pneg %p57
        %p295 = pneg %p54
        %s296 = smul.u32 2, %s27
        %p297 = scmp.lt.s32.totalorder %s26, 1
        %s298 = scalar_select %p297, %s26, 1
        %p299 = scmp.lt.s32.totalorder %s296, 1
        %s300 = scalar_select %p299, %s296, 1
        %s301 = smul.addr %s298, 2
        %s302 = sadd.s32 %s300, %s301
        %s303 = smul.addr %s302, 4
        %s304 = scalar_lea.vmem %s1, %s303
        %p305 = pneg %p85
        %p306 = pneg %p82
        %p307 = pneg %p106
        %p308 = pneg %p103
        %p309 = pneg %p127
        %p310 = pneg %p124
        %p311 = pneg %p148
        %p312 = pneg %p145
        %p313 = pneg %p169
        %p314 = pneg %p166
        %p315 = pneg %p190
        %p316 = pneg %p187
        %p317 = pneg %p218
        %p318 = pneg %p215
        %s319 = sand.u32 %s205, 1
        %s320 = scalar_lea.sflag [#allocation4], %s319
        %s321 = sand.u32 %s205, 1
        %s322 = smul.addr %s321, 8
        %s323 = scalar_lea.vmem [#allocation3], %s322
        %s324 = smul.u32 2, %s27
        %p325 = scmp.lt.s32.totalorder %s26, 1
        %s326 = scalar_select %p325, %s26, 1
        %p327 = scmp.lt.s32.totalorder %s324, 1
        %s328 = scalar_select %p327, %s324, 1
        %s329 = smul.addr %s326, 2
        %s330 = sadd.s32 %s328, %s329
        %s331 = smul.addr %s330, 4
        %s332 = scalar_lea.vmem %s0, %s331
        %s333 = smul.u32 2, %s27
        %s334 = smul.u32 2, %s27
        %p335 = scmp.lt.s32.totalorder %s26, 1
        %s336 = scalar_select %p335, %s26, 1
        %p337 = scmp.lt.s32.totalorder %s334, 1
        %s338 = scalar_select %p337, %s334, 1
        %s339 = smul.addr %s336, 2
        %s340 = sadd.s32 %s338, %s339
        %s341 = smul.addr %s340, 4
        %s342 = scalar_lea.vmem %s1, %s341
        %s343 = smul.u32 2, %s27
        %s344 = smul.u32 2, %s27
        %v345 = vld [vmem:[%s332] sm:$0xff]
        %v346 = vld [vmem:[%s342] sm:$0xff]
        %v347 = vld [vmem:[%s2] sm:$0xff]
        %v348 = vld [vmem:[%s2 + $0x8] sm:$0xff]
        %v349 = vld [vmem:[%s2 + $0x10] sm:$0xff]
        %v350 = vld [vmem:[%s2 + $0x18] sm:$0xff]
        %v351 = vld [vmem:[%s3] sm:$0xff]
        %v352 = vld [vmem:[%s3 + $0x8] sm:$0xff]
        %v353 = vld [vmem:[%s3 + $0x10] sm:$0xff]
        %v354 = vld [vmem:[%s3 + $0x18] sm:$0xff]
        %356 = vst [vmem:[#allocation1] ss:$2 sm:$0xff] %v346
        %v357 = vld.sshfl [vmem:[#allocation1] sm:$0xff pattern:$0x75316420]
        %v358 = vld.sshfl [vmem:[#allocation1 + $0x8] sm:$0xff pattern:$0x75316420]
        %vm359 = vcmask 31744
        %v361 = vsel %vm359, %v351, 0
        %v364 = vsel %vm359, %v352, 0
        %v367 = vsel %vm359, %v353, 0
        %v370 = vsel %vm359, %v354, 0
        %vm372 = vcmask 1043456
        %v373 = vsel %vm372, %v357, 0
        %v375 = vsel %vm372, %v358, 0
        %377 = vmatpush.msra.mxu0 0.0
        %378 = vmatpush.msra.mxu0 0.0
        %379 = vmatpush.msra.mxu0 0.0
        %380 = vmatpush.msra.mxu0 0.0
        %381 = vmatpush.msra.mxu0 0.0
        %382 = vmatpush.msra.mxu0 0.0
        %383 = vmatpush.msra.mxu0 0.0
        %384 = vmatpush.msra.mxu0 0.0
        %385 = vmatpush.msra.mxu0 0.0
        %386 = vmatpush.msra.mxu0 0.0
        %387 = vmatpush.msra.mxu0 0.0
        %388 = vmatpush.msra.mxu0 0.0
        %389 = vmatpush.msra.mxu0 0.0
        %390 = vmatpush.msra.mxu0 0.0
        %391 = vmatpush.msra.mxu0 0.0
        %392 = vmatpush.msra.mxu0 %v373
        %393 = vmatmul.f32.gmra.mxu0 %v361
        %v394 = vpop.f32.mrf.mxu0
        %v395 = vadd.f32 0.0, %v394
        %396 = vmatmul.f32.gmra.mxu0 %v364
        %v397 = vpop.f32.mrf.mxu0
        %v398 = vadd.f32 0.0, %v397
        %399 = vmatmul.f32.gmra.mxu0 %v367
        %v400 = vpop.f32.mrf.mxu0
        %v401 = vadd.f32 0.0, %v400
        %402 = vmatmul.f32.gmra.mxu0 %v370
        %v403 = vpop.f32.mrf.mxu0
        %v404 = vadd.f32 0.0, %v403
        %405 = vdwg.mxu0
        %406 = vmatpush.msra.mxu0 0.0
        %407 = vmatpush.msra.mxu0 0.0
        %408 = vmatpush.msra.mxu0 0.0
        %409 = vmatpush.msra.mxu0 0.0
        %410 = vmatpush.msra.mxu0 0.0
        %411 = vmatpush.msra.mxu0 0.0
        %412 = vmatpush.msra.mxu0 0.0
        %413 = vmatpush.msra.mxu0 0.0
        %414 = vmatpush.msra.mxu0 0.0
        %415 = vmatpush.msra.mxu0 0.0
        %416 = vmatpush.msra.mxu0 0.0
        %417 = vmatpush.msra.mxu0 0.0
        %418 = vmatpush.msra.mxu0 0.0
        %419 = vmatpush.msra.mxu0 0.0
        %420 = vmatpush.msra.mxu0 0.0
        %421 = vmatpush.msra.mxu0 %v375
        %422 = vmatmul.f32.gmra.mxu0 %v361
        %v423 = vpop.f32.mrf.mxu0
        %v424 = vadd.f32 0.0, %v423
        %425 = vmatmul.f32.gmra.mxu0 %v364
        %v426 = vpop.f32.mrf.mxu0
        %v427 = vadd.f32 0.0, %v426
        %428 = vmatmul.f32.gmra.mxu0 %v367
        %v429 = vpop.f32.mrf.mxu0
        %v430 = vadd.f32 0.0, %v429
        %431 = vmatmul.f32.gmra.mxu0 %v370
        %v432 = vpop.f32.mrf.mxu0
        %v433 = vadd.f32 0.0, %v432
        %434 = vdwg.mxu0
        %436 = vst [vmem:[#allocation1] ss:$2 sm:$0xff] %v345
        %v437 = vld.sshfl [vmem:[#allocation1] sm:$0xff pattern:$0x75316420]
        %v438 = vld.sshfl [vmem:[#allocation1 + $0x8] sm:$0xff pattern:$0x75316420]
        %v440 = vsel %vm359, %v347, 0
        %v443 = vsel %vm359, %v348, 0
        %v446 = vsel %vm359, %v349, 0
        %v449 = vsel %vm359, %v350, 0
        %v451 = vsel %vm372, %v437, 0
        %v453 = vsel %vm372, %v438, 0
        %455 = vmatpush.msra.mxu0 0.0
        %456 = vmatpush.msra.mxu0 0.0
        %457 = vmatpush.msra.mxu0 0.0
        %458 = vmatpush.msra.mxu0 0.0
        %459 = vmatpush.msra.mxu0 0.0
        %460 = vmatpush.msra.mxu0 0.0
        %461 = vmatpush.msra.mxu0 0.0
        %462 = vmatpush.msra.mxu0 0.0
        %463 = vmatpush.msra.mxu0 0.0
        %464 = vmatpush.msra.mxu0 0.0
        %465 = vmatpush.msra.mxu0 0.0
        %466 = vmatpush.msra.mxu0 0.0
        %467 = vmatpush.msra.mxu0 0.0
        %468 = vmatpush.msra.mxu0 0.0
        %469 = vmatpush.msra.mxu0 0.0
        %470 = vmatpush.msra.mxu0 %v451
        %471 = vmatmul.f32.gmra.mxu0 %v440
        %v472 = vpop.f32.mrf.mxu0
        %v473 = vadd.f32 %v395, %v472
        %474 = vmatmul.f32.gmra.mxu0 %v443
        %v475 = vpop.f32.mrf.mxu0
        %v476 = vadd.f32 %v398, %v475
        %477 = vmatmul.f32.gmra.mxu0 %v446
        %v478 = vpop.f32.mrf.mxu0
        %v479 = vadd.f32 %v401, %v478
        %480 = vmatmul.f32.gmra.mxu0 %v449
        %v481 = vpop.f32.mrf.mxu0
        %v482 = vadd.f32 %v404, %v481
        %483 = vdwg.mxu0
        %484 = vmatpush.msra.mxu0 0.0
        %485 = vmatpush.msra.mxu0 0.0
        %486 = vmatpush.msra.mxu0 0.0
        %487 = vmatpush.msra.mxu0 0.0
        %488 = vmatpush.msra.mxu0 0.0
        %489 = vmatpush.msra.mxu0 0.0
        %490 = vmatpush.msra.mxu0 0.0
        %491 = vmatpush.msra.mxu0 0.0
        %492 = vmatpush.msra.mxu0 0.0
        %493 = vmatpush.msra.mxu0 0.0
        %494 = vmatpush.msra.mxu0 0.0
        %495 = vmatpush.msra.mxu0 0.0
        %496 = vmatpush.msra.mxu0 0.0
        %497 = vmatpush.msra.mxu0 0.0
        %498 = vmatpush.msra.mxu0 0.0
        %499 = vmatpush.msra.mxu0 %v453
        %500 = vmatmul.f32.gmra.mxu0 %v440
        %v501 = vpop.f32.mrf.mxu0
        %v502 = vadd.f32 %v424, %v501
        %503 = vmatmul.f32.gmra.mxu0 %v443
        %v504 = vpop.f32.mrf.mxu0
        %v505 = vadd.f32 %v427, %v504
        %506 = vmatmul.f32.gmra.mxu0 %v446
        %v507 = vpop.f32.mrf.mxu0
        %v508 = vadd.f32 %v430, %v507
        %509 = vmatmul.f32.gmra.mxu0 %v449
        %v510 = vpop.f32.mrf.mxu0
        %v511 = vadd.f32 %v433, %v510
        %512 = vdwg.mxu0
        %v513 = vld [vmem:[%s4] sm:$0xff]
        %v514 = vld [vmem:[%s4 + $0x8] sm:$0xff]
        %v515 = vld [vmem:[%s4 + $0x10] sm:$0xff]
        %v516 = vld [vmem:[%s4 + $0x18] sm:$0xff]
        %518 = vset.pattern.permute.xlu0 0
        %519 = vperm.xlu0 %518, %v513
        %v520 = vpop.permute.xlu0 %519
        %523 = vset.pattern.permute.xlu0 0
        %524 = vperm.xlu0 %523, %v514
        %v525 = vpop.permute.xlu0 %524
        %528 = vset.pattern.permute.xlu0 0
        %529 = vperm.xlu0 %528, %v515
        %v530 = vpop.permute.xlu0 %529
        %533 = vset.pattern.permute.xlu0 0
        %534 = vperm.xlu0 %533, %v516
        %v535 = vpop.permute.xlu0 %534
        %v537 = vadd.f32 %v473, %v520
        %v538 = vadd.f32 %v502, %v520
        %v539 = vadd.f32 %v476, %v525
        %v540 = vadd.f32 %v505, %v525
        %v541 = vadd.f32 %v479, %v530
        %v542 = vadd.f32 %v508, %v530
        %v543 = vadd.f32 %v482, %v535
        %v544 = vadd.f32 %v511, %v535
        %v545 = vmax.f32 %v537, 0.0
        %v546 = vmax.f32 %v538, 0.0
        %v547 = vmax.f32 %v539, 0.0
        %v548 = vmax.f32 %v540, 0.0
        %v549 = vmax.f32 %v541, 0.0
        %v550 = vmax.f32 %v542, 0.0
        %v551 = vmax.f32 %v543, 0.0
        %v552 = vmax.f32 %v544, 0.0
        %v553 = vld [vmem:[%s5] sm:$0x1]
        %s554 = sld [smem:[#allocation2]]
        %v555 = vstv %s554
        %vm556 = vcmask 261120
        %v558 = vsel %vm556, %v553, 0
        %560 = vmatpush.msra.mxu0 0.0
        %561 = vmatpush.msra.mxu0 0.0
        %562 = vmatpush.msra.mxu0 0.0
        %563 = vmatpush.msra.mxu0 0.0
        %564 = vmatpush.msra.mxu0 0.0
        %565 = vmatpush.msra.mxu0 0.0
        %566 = vmatpush.msra.mxu0 0.0
        %567 = vmatpush.msra.mxu0 0.0
        %568 = vmatpush.msra.mxu0 0.0
        %569 = vmatpush.msra.mxu0 0.0
        %570 = vmatpush.msra.mxu0 0.0
        %571 = vmatpush.msra.mxu0 0.0
        %572 = vmatpush.msra.mxu0 %v551
        %573 = vmatpush.msra.mxu0 %v549
        %574 = vmatpush.msra.mxu0 %v547
        %575 = vmatpush.msra.mxu0 %v545
        %576 = vmatmul.f32.gmra.mxu0 %v558
        %v577 = vpop.f32.mrf.mxu0
        %v578 = vadd.f32 %v555, %v577
        %579 = vdwg.mxu0
        %580 = vmatpush.msra.mxu0 0.0
        %581 = vmatpush.msra.mxu0 0.0
        %582 = vmatpush.msra.mxu0 0.0
        %583 = vmatpush.msra.mxu0 0.0
        %584 = vmatpush.msra.mxu0 0.0
        %585 = vmatpush.msra.mxu0 0.0
        %586 = vmatpush.msra.mxu0 0.0
        %587 = vmatpush.msra.mxu0 0.0
        %588 = vmatpush.msra.mxu0 0.0
        %589 = vmatpush.msra.mxu0 0.0
        %590 = vmatpush.msra.mxu0 0.0
        %591 = vmatpush.msra.mxu0 0.0
        %592 = vmatpush.msra.mxu0 %v552
        %593 = vmatpush.msra.mxu0 %v550
        %594 = vmatpush.msra.mxu0 %v548
        %595 = vmatpush.msra.mxu0 %v546
        %596 = vmatmul.f32.gmra.mxu0 %v558
        %v597 = vpop.f32.mrf.mxu0
        %v598 = vadd.f32 %v555, %v597
        %599 = vdwg.mxu0
        %v600 = vxor.u32 %v578, 2147483648
        %v601 = vxor.u32 %v598, 2147483648
        %v602 = vmul.f32 %v600, 1.442695
        %v603 = vpow.pop %v602
        %v604 = vmul.f32 %v601, 1.442695
        %v605 = vpow.pop %v604
        %v606 = vadd.f32 %v603, 1.0
        %v607 = vadd.f32 %v605, 1.0
        %v608 = vrcp.pop %v606
        %v609 = vmul.f32 %v606, %v608
        %v610 = vsub.f32 1.0, %v609
        %v611 = vmul.f32 %v608, %v610
        %v612 = vadd.f32 %v608, %v611
        %vm613 = vweird.f32 %v606
        %vm614 = vweird.f32 %v608
        %vm615 = vmor %vm613, %vm614
        %v616 = vsel %vm615, %v608, %v612
        %v617 = vand.u32 2147483647, %v606
        %vm618 = vcmp.eq.f32.partialorder %v617, 8.507059e+37
        %v619 = vand.u32 %v606, 2147483648
        %v620 = vor.u32 1.1754944e-38, %v619
        %v621 = vsel %vm618, %v620, %v616
        %v622 = vmul.f32 1.0, %v621
        %v623 = vrcp.pop %v607
        %v624 = vmul.f32 %v607, %v623
        %v625 = vsub.f32 1.0, %v624
        %v626 = vmul.f32 %v623, %v625
        %v627 = vadd.f32 %v623, %v626
        %vm628 = vweird.f32 %v607
        %vm629 = vweird.f32 %v623
        %vm630 = vmor %vm628, %vm629
        %v631 = vsel %vm630, %v623, %v627
        %v632 = vand.u32 2147483647, %v607
        %vm633 = vcmp.eq.f32.partialorder %v632, 8.507059e+37
        %v634 = vand.u32 %v607, 2147483648
        %v635 = vor.u32 1.1754944e-38, %v634
        %v636 = vsel %vm633, %v635, %v631
        %v637 = vmul.f32 1.0, %v636
        %v638 = vperm.slane %v622, 0
        %v639 = vperm.slane %v637, 0
        %v642 = vrot.slane %v639, 4
        %v643 = vsel %vm372, %v638, %v642
        %v645 = vmul.f32 %v346, %v643
        %646 = vst [vmem:[%s323] sm:$0xff] %v645
        %s647 = sand.u32 %s205, 1
        %s648 = scalar_lea.sflag [#allocation4], %s647
        %s649 = sand.u32 %s205, 1
        %s650 = smul.addr %s649, 8
        %s651 = scalar_lea.vmem [#allocation3], %s650
        // Predicated region
        $region49: #{tpu_custom_call.1} parent=47 // pred_check
          %p652 = pneg %p215
        $region50: #{tpu_custom_call.1} parent=47 // pred_check_branch
          %654 = sbr.rel (%p652) target = $region52
        $region51: #{tpu_custom_call.1} parent=47 // pred_region
          %s655 = smul.u32 2, %s27
          %657 = vsyncadd %s648, 0
          %s658 = smul.addr %s26, 2
          %s659 = sadd.s32 %s655, %s658
          %s660 = smul.addr %s659, 4
          %s661 = scalar_lea.hbm %s7, %s660
          %s663 = sshll.u32 %s651, 4
          %s664 = int_to_ptr.vmem [resolvable:$true] %s663
          %s665 = sshll.u32 %s661, 4
          %s666 = int_to_ptr.hbm [resolvable:$true] %s665
          %668 = dma.vmem_to_hbm [thread:$0]  %s664, 128, %s666, %s648
        $region52: #{tpu_custom_call.1} parent=47 // pred_fallthru
          _
      $region48: #{tpu_custom_call.1} parent=5 // pred_fallthru
        _
      %p669 = scmp.le.s32.totalorder 2, %s17
      // Predicated region
      $region53: #{tpu_custom_call.1} parent=5 // pred_check
        %p670 = pneg %p669
      $region54: #{tpu_custom_call.1} parent=5 // pred_check_branch
        %672 = sbr.rel (%p670) target = $region56
      $region55: #{tpu_custom_call.1} parent=5 // pred_region
        %s673 = ssub.s32 %s17, 2
        // Predicated region
        $region57: #{tpu_custom_call.1} parent=55 // pred_check
          %p674 = pneg %p221
        $region58: #{tpu_custom_call.1} parent=55 // pred_check_branch
          %676 = sbr.rel (%p674) target = $region60
        $region59: #{tpu_custom_call.1} parent=55 // pred_region
          %s677 = sand.u32 %s206, 1
          %s678 = scalar_lea.sflag [#allocation4], %s677
          %s679 = sand.u32 %s206, 1
          %s680 = smul.addr %s679, 8
          %s681 = scalar_lea.vmem [#allocation3], %s680
          %683 = dma.done %s678, 128
        $region60: #{tpu_custom_call.1} parent=55 // pred_fallthru
          _
      $region56: #{tpu_custom_call.1} parent=5 // pred_fallthru
        _
    $region6: #{tpu_custom_call.1} parent=1 // loop_footer
      %s21 = sadd.s32 1, %s17
    $region7: #{tpu_custom_call.1} parent=1 // loop_footer_branch
      %16 = sbr.rel target = $region3
    $region8: #{tpu_custom_call.1} parent=1 // loop_exit
      _
    %684 = vsyncpa [#allocation4], 1
    %s685 = scalar_lea.sflag [#allocation4], 1
    %686 = vsyncpa %s685, 1

</llo_original>
